<compile_context>
chip_gen: v7x
topology: tpu7x:2x2x1
jax: 0.10.0
libtpu: 0.0.40
codegen_flags: <defaults>
</compile_context>

<pallas_src>
import math

import jax
import jax.numpy as jnp
from jax.experimental import pallas as pl
from jax.experimental.pallas import tpu as pltpu


_LANE = 128
# Per-tile byte budget for (x tile + pos tile + out tile).  Double-buffered
# this is ~24 MiB, safe within v7x's 32 MiB scoped VMEM default and generous
# on v5e/v6e (128 MiB physical).
_TILE_SET_BYTES = 12 << 20
_VMEM_LIMIT_BYTES = 32 * 1024 * 1024


def _add_pos_kernel(x_ref, pos_ref, o_ref):
    # x_ref/o_ref: (bt, tr, L) tile spanning bt batch elements; pos_ref: (tr, L) f32.
    x = x_ref[...].astype(jnp.float32)
    o_ref[...] = (x + pos_ref[...][None, :, :]).astype(o_ref.dtype)


def _add_pos_emb(x3, pos2, out_dtype, *, donate_x=False):
    """x3: (B, R, L); pos2: (R, L) float32. Returns x3 + pos2 as (B, R, L)."""
    B, R, L = x3.shape
    assert pos2.shape == (R, L), (pos2.shape, (R, L))

    x_bytes = jnp.dtype(x3.dtype).itemsize
    out_bytes = jnp.dtype(out_dtype).itemsize
    pos_bytes = 4  # pos kept in f32

    # Sublane rounding for the packed dtype of x: 8 (f32), 16 (bf16), 32 (i8/fp8).
    sub_mult = 8 * max(1, 4 // x_bytes)

    # Dtype-aware row budget: rows such that the x+pos+out tiles fit the budget.
    bytes_per_row = L * (x_bytes + pos_bytes + out_bytes)
    rows_budget = max(sub_mult, (_TILE_SET_BYTES // bytes_per_row) // sub_mult * sub_mult)

    if R <= rows_budget:
        # Whole per-batch slab fits in one tile -> fold batch elements to keep
        # DMAs large and cut the grid-step count.
        tr = R
        bt = min(B, max(1, rows_budget // R))
    else:
        tr = rows_budget
        bt = 1

    num_rt = pl.cdiv(R, tr)
    num_bt = pl.cdiv(B, bt)

    io_aliases = {0: 0} if (donate_x and x3.dtype == out_dtype) else {}

    return pl.pallas_call(
        _add_pos_kernel,
        out_shape=jax.ShapeDtypeStruct((B, R, L), out_dtype),
        grid_spec=pltpu.PrefetchScalarGridSpec(
            num_scalar_prefetch=0,
            # Batch-tile axis is the innermost (fastest) grid axis so pos's
            # block index is constant across it -> its refetch is elided.
            grid=(num_rt, num_bt),
            in_specs=[
                pl.BlockSpec((bt, tr, L), lambda j, b: (b, j, 0)),
                pl.BlockSpec((tr, L), lambda j, b: (j, 0)),
            ],
            out_specs=pl.BlockSpec((bt, tr, L), lambda j, b: (b, j, 0)),
        ),
        compiler_params=pltpu.CompilerParams(
            dimension_semantics=("parallel", "parallel"),
            vmem_limit_bytes=_VMEM_LIMIT_BYTES,
        ),
        input_output_aliases=io_aliases,
    )(x3, pos2)


class LearnedPositionEmbed:
    """JAX/Pallas port of videosaur LearnedPositionEmbed (forward only)."""

    def __init__(self, dim, *, n_patches=None, size=None,
                 initial_scale=None, dropout=0.0, key=None):
        if n_patches is None and size is None:
            raise ValueError("Need to specify either `n_patches` or `size`")
        if n_patches is not None and size is not None:
            raise ValueError("Can not specify both `n_patches` and `size`")
        if initial_scale is None:
            initial_scale = dim ** (-0.5)
        if key is None:
            key = jax.random.PRNGKey(0)

        if n_patches is not None:
            self.expected_dims = 3
            shape = (1, n_patches, dim)
        else:
            self.expected_dims = 4
            if isinstance(size, int):
                size = (size, size)
            shape = (1, dim, size[0], size[1])

        # Deterministic init mimicking nn.init.trunc_normal_(std=s, a=-2s, b=2s).
        self.pos_emb = (
            jax.random.truncated_normal(key, -2.0, 2.0, shape, jnp.float32)
            * initial_scale
        )
        # TODO(synk): dropout > 0 (training-time RNG masking) not implemented;
        # dropout=0.0 matches the PyTorch module's `self.dropout = None` path.
        assert dropout == 0.0, "only dropout=0.0 supported in this port"

        # Lane-dense flattened view of the embedding.
        per_item = math.prod(shape[1:])
        if per_item % _LANE == 0:
            self._lanes = _LANE
        else:
            # Fallback: widest trailing product (2D -> H*W, 1D -> dim), NOT the
            # raw last dim, to avoid narrow masked stores / VMEM lane padding.
            self._lanes = math.prod(shape[2:])
        self._rows = per_item // self._lanes
        self._pos_flat = self.pos_emb.reshape(self._rows, self._lanes)

    def __call__(self, x):
        if self.expected_dims == 3:
            assert x.ndim == 3, f"Expected (batch, patches, dim), got {x.shape}"
        else:
            assert x.ndim == 4, f"Expected (batch, channels, height, width), got {x.shape}"
        assert x.shape[1:] == self.pos_emb.shape[1:], (
            f"Input trailing dims {x.shape[1:]} != pos_emb {self.pos_emb.shape[1:]}")

        B = x.shape[0]
        out_dtype = jnp.result_type(x.dtype, self.pos_emb.dtype)
        # Pure layout plumbing: contiguous reshape to the lane-dense slab.
        x3 = x.reshape(B, self._rows, self._lanes)
        # donate_x left False here since callers (and this test) may reuse x;
        # flip to True when the caller donates its input buffer.
        out = _add_pos_emb(x3, self._pos_flat, out_dtype, donate_x=False)
        return out.reshape((B,) + x.shape[1:])


if __name__ == "__main__":
    key = jax.random.PRNGKey(0)
    k_p1, k_p2, k_x1, k_x2 = jax.random.split(key, 4)

    # --- 1D (n_patches) mode: x shape (batch, patches, dim) ---
    B, N, D = 2, 8, 32
    mod1d = LearnedPositionEmbed(D, n_patches=N, key=k_p1)
    x1 = jax.random.normal(k_x1, (B, N, D), jnp.float32)
    y1 = jax.block_until_ready(mod1d(x1))
    ref1 = x1 + mod1d.pos_emb
    assert y1.shape == (B, N, D)
    assert jnp.allclose(y1, ref1, atol=1e-6), "1D mode mismatch"

    # --- 2D (size) mode: x shape (batch, channels, height, width) NCHW ---
    B, C, H, W = 2, 4, 16, 16
    mod2d = LearnedPositionEmbed(C, size=(H, W), key=k_p2)
    x2 = jax.random.normal(k_x2, (B, C, H, W), jnp.float32)
    y2 = jax.block_until_ready(mod2d(x2))
    ref2 = x2 + mod2d.pos_emb
    assert y2.shape == (B, C, H, W)
    assert jnp.allclose(y2, ref2, atol=1e-6), "2D mode mismatch"

    # --- bf16 promotion path (bf16 x + f32 pos -> f32 out, fold batch) ---
    x3 = jax.random.normal(k_x1, (4, N, D), jnp.bfloat16)
    y3 = jax.block_until_ready(mod1d(x3))
    ref3 = x3.astype(jnp.float32) + mod1d.pos_emb
    assert y3.dtype == jnp.float32
    assert jnp.allclose(y3, ref3, atol=1e-2), "bf16 promotion mismatch"

    print("KERNEL_OK")
</pallas_src>

<mosaic_0001>
module attributes {stable_mosaic.version = 11 : i64} {
  func.func @_add_pos_kernel(%arg0: i32, %arg1: i32, %arg2: memref<2x2x128xf32, #tpu.memory_space<vmem>>, %arg3: memref<2x128xf32, #tpu.memory_space<vmem>>, %arg4: memref<2x2x128xf32, #tpu.memory_space<vmem>>) attributes {dimension_semantics = [#tpu.dimension_semantics<parallel>, #tpu.dimension_semantics<parallel>], iteration_bounds = array<i64: 1, 1>, scalar_prefetch = 0 : i64, scratch_operands = 0 : i64, tpu.core_type = #tpu.core_type<tc>, window_params = [{transform_indices = @transform_0, window_bounds = array<i64: 2, 2, 128>}, {transform_indices = @transform_1, window_bounds = array<i64: 2, 128>}, {transform_indices = @transform_2, window_bounds = array<i64: 2, 2, 128>}]} {
    %c0 = arith.constant 0 : index
    %c0_0 = arith.constant 0 : index
    %c0_1 = arith.constant 0 : index
    %0 = vector.load %arg2[%c0, %c0_0, %c0_1] : memref<2x2x128xf32, #tpu.memory_space<vmem>>, vector<2x2x128xf32>
    %c0_2 = arith.constant 0 : index
    %c0_3 = arith.constant 0 : index
    %1 = vector.load %arg3[%c0_2, %c0_3] : memref<2x128xf32, #tpu.memory_space<vmem>>, vector<2x128xf32>
    %2 = vector.shape_cast %1 : vector<2x128xf32> to vector<1x2x128xf32>
    %3 = vector.broadcast %2 : vector<1x2x128xf32> to vector<2x2x128xf32>
    %4 = arith.addf %0, %3 : vector<2x2x128xf32>
    %c0_4 = arith.constant 0 : index
    %c0_5 = arith.constant 0 : index
    %c0_6 = arith.constant 0 : index
    %5 = vector.load %arg4[%c0_4, %c0_5, %c0_6] : memref<2x2x128xf32, #tpu.memory_space<vmem>>, vector<2x2x128xf32>
    tpu.vector_store %arg4[%c0_4, %c0_5, %c0_6], %4 {strides = array<i32>} : memref<2x2x128xf32, #tpu.memory_space<vmem>>, vector<2x2x128xf32>,
    return
  }
  func.func @transform_0(%arg0: i32, %arg1: i32) -> (i32, i32, i32) {
    %c0_i32 = arith.constant 0 : i32
    %c0_i32_0 = arith.constant 0 : i32
    return %arg1, %arg0, %c0_i32 : i32, i32, i32
  }
  func.func @transform_1(%arg0: i32, %arg1: i32) -> (i32, i32) {
    %c0_i32 = arith.constant 0 : i32
    %c0_i32_0 = arith.constant 0 : i32
    return %arg0, %c0_i32 : i32, i32
  }
  func.func @transform_2(%arg0: i32, %arg1: i32) -> (i32, i32, i32) {
    %c0_i32 = arith.constant 0 : i32
    %c0_i32_0 = arith.constant 0 : i32
    return %arg1, %arg0, %c0_i32 : i32, i32, i32
  }
}

</mosaic_0001>

<llo_original>
// kernel: tpu_custom_call.1
$region0: #{tpu_custom_call.1}
  #allocation0 [shape = 'u32[]', space=smem, size = 0x4, offset = 0x4, fixed_abs, tag = 'smem constant byte address 0x4 - core index']
  #allocation1 [shape = 'u32[144,128]{1,0:T(1,128)}', space=vmem, size = 0x12000, scoped, tag = 'internal scratch']
  %s0 = inlined_call_operand.hbm [shape: f32[2,2,128], index: 0, kind: input, shape index: {}]
  %s1 = inlined_call_operand.vmem [shape: f32[2,128], index: 1, kind: input, shape index: {}]
  %s2 = inlined_call_operand.hbm [shape: f32[2,2,128], index: 2, kind: output, shape index: {}]
  %s3 = sld [smem:[#allocation0]]
  $region22: #{tpu_custom_call.1} parent=0
    _
  %s5 = ssub.s32 1, %s3
  %s6 = scalar_select 0, %s5, %s3
  $region1: #{tpu_custom_call.1} parent=0
    #allocation2 [shape = 'u8[2048]{0}', space=vmem, size = 0x800, scoped, tag = 'input window, operand 0, single buffered']
    #allocation3 [shape = 's32[1]{0}', space=sflag, size = 0x4, scoped, tag = 'scoped memory for tpu_custom_call.1']
    #allocation4 [shape = 's32[1]{0}', space=sflag, size = 0x4, scoped, tag = 'scoped memory for tpu_custom_call.1']
    #allocation5 [shape = 'u8[2048]{0}', space=vmem, size = 0x800, scoped, tag = 'output window, operand 0, single buffered']
    %7 = vsyncpa [#allocation3], 0
    %8 = vsyncpa [#allocation4], 0
    // Predicated region
    $region2: #{tpu_custom_call.1} parent=1 // pred_check
      _
    $region3: #{tpu_custom_call.1} parent=1 // pred_check_branch
      %10 = sbr.rel (0) target = $region5
    $region4: #{tpu_custom_call.1} parent=1 // pred_region
      %s12 = ssub.s32 64, 64
      %13 = vsyncadd [#allocation3], %s12
      %s14 = sshll.u32 [#allocation2], 4
      %s15 = int_to_ptr.vmem [resolvable:$true] %s14
      %20 = dma.hbm_to_vmem [thread:$0]  %s0, 64, %s15, [#allocation3], 32, 32, 2
    $region5: #{tpu_custom_call.1} parent=1 // pred_fallthru
      _
    // Predicated region
    $region6: #{tpu_custom_call.1} parent=1 // pred_check
      _
    $region7: #{tpu_custom_call.1} parent=1 // pred_check_branch
      %22 = sbr.rel (0) target = $region9
    $region8: #{tpu_custom_call.1} parent=1 // pred_region
      _
    $region9: #{tpu_custom_call.1} parent=1 // pred_fallthru
      _
    // Predicated region
    $region10: #{tpu_custom_call.1} parent=1 // pred_check
      _
    $region11: #{tpu_custom_call.1} parent=1 // pred_check_branch
      %24 = sbr.rel (0) target = $region13
    $region12: #{tpu_custom_call.1} parent=1 // pred_region
      %25 = dma.done [#allocation3], 64
    $region13: #{tpu_custom_call.1} parent=1 // pred_fallthru
      _
    %v26 = vld [vmem:[#allocation2] sm:$0x3]
    %v27 = vld [vmem:[#allocation2 + $0x2] sm:$0x3]
    %v28 = vld [vmem:[%s1] sm:$0x3]
    %v29 = vadd.f32 %v26, %v28
    %v30 = vadd.f32 %v27, %v28
    %31 = vst [vmem:[#allocation5] sm:$0x3] %v29
    %32 = vst [vmem:[#allocation5 + $0x2] sm:$0x3] %v30
    // Predicated region
    $region14: #{tpu_custom_call.1} parent=1 // pred_check
      _
    $region15: #{tpu_custom_call.1} parent=1 // pred_check_branch
      %34 = sbr.rel (0) target = $region17
    $region16: #{tpu_custom_call.1} parent=1 // pred_region
      %s36 = ssub.s32 64, 64
      %37 = vsyncadd [#allocation4], %s36
      %s38 = sshll.u32 [#allocation5], 4
      %s39 = int_to_ptr.vmem [resolvable:$true] %s38
      %44 = dma.vmem_to_hbm [thread:$0]  %s39, 64, %s2, [#allocation4], 32, 32, 2
    $region17: #{tpu_custom_call.1} parent=1 // pred_fallthru
      _
    // Predicated region
    $region18: #{tpu_custom_call.1} parent=1 // pred_check
      _
    $region19: #{tpu_custom_call.1} parent=1 // pred_check_branch
      %46 = sbr.rel (0) target = $region21
    $region20: #{tpu_custom_call.1} parent=1 // pred_region
      %47 = dma.done [#allocation4], 64
    $region21: #{tpu_custom_call.1} parent=1 // pred_fallthru
      _
    %48 = vsyncpa [#allocation3], 1
    %49 = vsyncpa [#allocation4], 1

</llo_original>
